<compile_context>
chip_gen: v7x
topology: tpu7x:2x2x1
jax: 0.10.0
libtpu: 0.0.40
codegen_flags: <defaults>
</compile_context>

<pallas_src>
import jax
import jax.numpy as jnp
from jax.experimental import pallas as pl
from jax.experimental.pallas import tpu as pltpu

# ---- problem sizes (small, consistent with a YOLO-style head) -------------
B, C, H, W_SP = 2, 4, 16, 16          # NCHW input
A, D = 8, 16                          # anchors, per-anchor outputs (D >= 5)
F = C * H * W_SP                      # 1024 flattened features
OBJ_IDX = 4                           # objectness channel (index 4)
F_SUB, F_LANE = 8, 128                # F = 8 * 128 -> dense (8,128) vreg tiles
assert F == F_SUB * F_LANE


def fold_detection_head_params(w, b, *, n_anchors=A, n_det=D, obj_idx=OBJ_IDX):
    """One-time parameter fold (plain JAX at setup time, not per call).

    Because `y[..., 4:5].mean(dim=1)` is linear in y, it commutes with the
    dense head:  out[b] = sum_f x[b,f] * mean_a W[f, a*D+obj] + mean_a b[a*D+obj].
    Only 1 effective column of the original (F, A*D) weight survives, and it
    is reshaped to a single dense (8, 128) vreg tile.
    """
    w3 = w.reshape(F, n_anchors, n_det)
    w_eff = jnp.mean(w3[:, :, obj_idx], axis=1)
    w_eff = w_eff.reshape(F_SUB, F_LANE).astype(jnp.float32)
    b_eff = jnp.mean(b.reshape(n_anchors, n_det)[:, obj_idx])
    b_eff = b_eff.reshape(1, 1).astype(jnp.float32)
    return w_eff, b_eff


def _yolo_wrapper_kernel(x_ref, w_ref, b_ref, o_ref):
    # x_ref: (B, 8, 128) f32 VMEM   w_ref: (8, 128) f32 VMEM
    # b_ref: (1, 1)      f32 SMEM   o_ref: (B, 1)   f32 VMEM
    xw = x_ref[...] * w_ref[...]               # dense vmuls; w vregs reused per batch row
    s = jnp.sum(xw, axis=-1)                   # lane reduce   -> (B, 8)
    s = jnp.sum(s, axis=-1, keepdims=True)     # sublane reduce -> (B, 1)
    o_ref[...] = s + b_ref[0, 0]               # scalar bias straight from SMEM


def yolo_model_wrapper_forward(x_nchw, w_eff, b_eff):
    """Pallas equivalent of YOLOModelWrapper(model).forward(x) with folded params.

    x_nchw: (B, C, H, W) float32
    w_eff:  (8, 128)     float32   (anchor-mean objectness weight, vreg-dense)
    b_eff:  (1, 1)       float32   (anchor-mean objectness bias, lives in SMEM)
    returns (B,) float32
    """
    x_tiled = x_nchw.reshape(B, F_SUB, F_LANE).astype(jnp.float32)
    cost = pl.CostEstimate(
        flops=2 * B * F,
        transcendentals=0,
        bytes_accessed=4 * (B * F + F + 1 + B),
    )
    out = pl.pallas_call(
        _yolo_wrapper_kernel,
        out_shape=jax.ShapeDtypeStruct((B, 1), jnp.float32),
        grid=(1,),
        in_specs=[
            pl.BlockSpec((B, F_SUB, F_LANE), lambda i: (0, 0, 0)),
            pl.BlockSpec((F_SUB, F_LANE), lambda i: (0, 0)),
            pl.BlockSpec(memory_space=pltpu.MemorySpace.SMEM),   # scalar bias, no VMEM DMA
        ],
        out_specs=pl.BlockSpec((B, 1), lambda i: (0, 0)),
        compiler_params=pltpu.CompilerParams(
            dimension_semantics=("arbitrary",)),
        cost_estimate=cost,
    )(x_tiled, w_eff, b_eff)
    return out.reshape(B)


def _reference(x_nchw, w, b):
    """Pure-JAX reference mirroring the original PyTorch semantics
    (full un-folded head + wrapper reduction)."""
    x_flat = x_nchw.reshape(B, F)
    y = (x_flat @ w + b).reshape(B, A, D)          # model output, dim >= 3, last >= 5
    y = y[..., 4:5].mean(axis=1)                   # (B, 1)
    return jnp.squeeze(y, axis=-1)                 # (B,)


if __name__ == "__main__":
    key = jax.random.PRNGKey(0)
    kx, kw, kb = jax.random.split(key, 3)

    x = jax.random.normal(kx, (B, C, H, W_SP), dtype=jnp.float32)
    # Deterministic synthetic detection-head parameters (no checkpoint load).
    w = jax.random.normal(kw, (F, A * D), dtype=jnp.float32) * 0.02
    b = jax.random.normal(kb, (1, A * D), dtype=jnp.float32) * 0.1

    # One-time param fold (setup cost, outside the per-call kernel path).
    w_eff, b_eff = fold_detection_head_params(w, b)

    out = jax.block_until_ready(yolo_model_wrapper_forward(x, w_eff, b_eff))
    ref = jax.block_until_ready(_reference(x, w, b))

    assert out.shape == (B,), out.shape
    assert jnp.allclose(out, ref, atol=1e-4, rtol=1e-4), (out, ref)
    print("KERNEL_OK")
</pallas_src>

<mosaic_0001>
module attributes {stable_mosaic.version = 11 : i64} {
  func.func @_yolo_wrapper_kernel(%arg0: i32, %arg1: memref<2x8x128xf32, #tpu.memory_space<vmem>>, %arg2: memref<8x128xf32, #tpu.memory_space<vmem>>, %arg3: memref<1x1xf32, #tpu.memory_space<smem>>, %arg4: memref<2x1xf32, #tpu.memory_space<vmem>>) attributes {dimension_semantics = [#tpu.dimension_semantics<arbitrary>], iteration_bounds = array<i64: 1>, scalar_prefetch = 0 : i64, scratch_operands = 0 : i64, tpu.core_type = #tpu.core_type<tc>, window_params = [{pipeline_mode = #tpu.pipeline_mode<synchronous>, transform_indices = @transform_0, window_bounds = array<i64: 2, 8, 128>}, {pipeline_mode = #tpu.pipeline_mode<synchronous>, transform_indices = @transform_1, window_bounds = array<i64: 8, 128>}, {transform_indices = @transform_2, window_bounds = array<i64: 1, 1>}, {pipeline_mode = #tpu.pipeline_mode<synchronous>, transform_indices = @transform_3, window_bounds = array<i64: 2, 1>}]} {
    %c0 = arith.constant 0 : index
    %c0_0 = arith.constant 0 : index
    %c0_1 = arith.constant 0 : index
    %0 = vector.load %arg1[%c0, %c0_0, %c0_1] : memref<2x8x128xf32, #tpu.memory_space<vmem>>, vector<2x8x128xf32>
    %c0_2 = arith.constant 0 : index
    %c0_3 = arith.constant 0 : index
    %1 = vector.load %arg2[%c0_2, %c0_3] : memref<8x128xf32, #tpu.memory_space<vmem>>, vector<8x128xf32>
    %2 = vector.shape_cast %1 : vector<8x128xf32> to vector<1x8x128xf32>
    %3 = vector.broadcast %2 : vector<1x8x128xf32> to vector<2x8x128xf32>
    %4 = arith.mulf %0, %3 : vector<2x8x128xf32>
    %cst = arith.constant dense<0.000000e+00> : vector<2x8xf32>
    %5 = vector.multi_reduction <add>, %4, %cst [2] : vector<2x8x128xf32> to vector<2x8xf32>
    %cst_4 = arith.constant dense<0.000000e+00> : vector<2xf32>
    %6 = vector.multi_reduction <add>, %5, %cst_4 [1] : vector<2x8xf32> to vector<2xf32>
    %7 = vector.shape_cast %6 : vector<2xf32> to vector<2x1xf32>
    %c0_5 = arith.constant 0 : index
    %c0_6 = arith.constant 0 : index
    %8 = memref.load %arg3[%c0_5, %c0_6] : memref<1x1xf32, #tpu.memory_space<smem>>
    %9 = vector.broadcast %8 : f32 to vector<2x1xf32>
    %10 = arith.addf %7, %9 : vector<2x1xf32>
    %c0_7 = arith.constant 0 : index
    %c0_8 = arith.constant 0 : index
    %11 = vector.load %arg4[%c0_7, %c0_8] : memref<2x1xf32, #tpu.memory_space<vmem>>, vector<2x1xf32>
    tpu.vector_store %arg4[%c0_7, %c0_8], %10 {strides = array<i32>} : memref<2x1xf32, #tpu.memory_space<vmem>>, vector<2x1xf32>,
    return
  }
  func.func @transform_0(%arg0: i32) -> (i32, i32, i32) {
    %c0_i32 = arith.constant 0 : i32
    %c0_i32_0 = arith.constant 0 : i32
    %c0_i32_1 = arith.constant 0 : i32
    %c0_i32_2 = arith.constant 0 : i32
    return %c0_i32, %c0_i32_0, %c0_i32_1 : i32, i32, i32
  }
  func.func @transform_1(%arg0: i32) -> (i32, i32) {
    %c0_i32 = arith.constant 0 : i32
    %c0_i32_0 = arith.constant 0 : i32
    %c0_i32_1 = arith.constant 0 : i32
    return %c0_i32, %c0_i32_0 : i32, i32
  }
  func.func @transform_2(%arg0: i32) -> (i32, i32) {
    %c0_i32 = arith.constant 0 : i32
    %c0_i32_0 = arith.constant 0 : i32
    %c0_i32_1 = arith.constant 0 : i32
    return %c0_i32, %c0_i32_0 : i32, i32
  }
  func.func @transform_3(%arg0: i32) -> (i32, i32) {
    %c0_i32 = arith.constant 0 : i32
    %c0_i32_0 = arith.constant 0 : i32
    %c0_i32_1 = arith.constant 0 : i32
    return %c0_i32, %c0_i32_0 : i32, i32
  }
}

</mosaic_0001>

<llo_original>
// kernel: tpu_custom_call.1
$region0: #{tpu_custom_call.1}
  #allocation0 [shape = 'u32[]', space=smem, size = 0x4, offset = 0x4, fixed_abs, tag = 'smem constant byte address 0x4 - core index']
  #allocation1 [shape = 'u32[144,128]{1,0:T(1,128)}', space=vmem, size = 0x12000, scoped, tag = 'internal scratch']
  #allocation2 [shape = 'f32[1,1]{1,0:T(1,128)S(6)}', space=smem, size = 0x200, scoped, tag = 'scoped memory for tpu_custom_call.1']
  %s0 = inlined_call_operand.hbm [shape: f32[2,8,128], index: 0, kind: input, shape index: {}]
  %s1 = inlined_call_operand.hbm [shape: f32[8,128], index: 1, kind: input, shape index: {}]
  %s2 = inlined_call_operand.<no memory space> [shape: f32[1,1], index: 2, kind: input, shape index: {}]
  %s3 = inlined_call_operand.vmem [shape: f32[2,1], index: 3, kind: output, shape index: {}]
  %s4 = sld [smem:[#allocation0]]
  $region30: #{tpu_custom_call.1} parent=0
    _
  %s6 = ssub.s32 1, %s4
  %s7 = scalar_select 0, %s6, %s4
  %8 = sst [smem:[#allocation2]] %s2
  $region1: #{tpu_custom_call.1} parent=0
    #allocation3 [shape = 'u8[8192]{0}', space=vmem, size = 0x2000, scoped, tag = 'input window, operand 0, single buffered']
    #allocation4 [shape = 's32[1]{0}', space=sflag, size = 0x4, scoped, tag = 'scoped memory for tpu_custom_call.1']
    #allocation5 [shape = 'u8[4096]{0}', space=vmem, size = 0x1000, scoped, tag = 'input window, operand 1, single buffered']
    #allocation6 [shape = 's32[1]{0}', space=sflag, size = 0x4, scoped, tag = 'scoped memory for tpu_custom_call.1']
    %9 = vsyncpa [#allocation4], 0
    %10 = vsyncpa [#allocation6], 0
    // Predicated region
    $region2: #{tpu_custom_call.1} parent=1 // pred_check
      _
    $region3: #{tpu_custom_call.1} parent=1 // pred_check_branch
      %12 = sbr.rel (0) target = $region5
    $region4: #{tpu_custom_call.1} parent=1 // pred_region
      %s14 = ssub.s32 256, 256
      %15 = vsyncadd [#allocation4], %s14
      %s16 = sshll.u32 [#allocation3], 4
      %s17 = int_to_ptr.vmem [resolvable:$true] %s16
      %22 = dma.hbm_to_vmem [thread:$0]  %s0, 256, %s17, [#allocation4], 128, 128, 8
    $region5: #{tpu_custom_call.1} parent=1 // pred_fallthru
      _
    // Predicated region
    $region6: #{tpu_custom_call.1} parent=1 // pred_check
      _
    $region7: #{tpu_custom_call.1} parent=1 // pred_check_branch
      %24 = sbr.rel (0) target = $region9
    $region8: #{tpu_custom_call.1} parent=1 // pred_region
      %s26 = ssub.s32 128, 128
      %27 = vsyncadd [#allocation6], %s26
      %s29 = sshll.u32 [#allocation5], 4
      %s30 = int_to_ptr.vmem [resolvable:$true] %s29
      %32 = dma.hbm_to_vmem [thread:$0]  %s1, 128, %s30, [#allocation6]
    $region9: #{tpu_custom_call.1} parent=1 // pred_fallthru
      _
    // Predicated region
    $region10: #{tpu_custom_call.1} parent=1 // pred_check
      _
    $region11: #{tpu_custom_call.1} parent=1 // pred_check_branch
      %34 = sbr.rel (0) target = $region13
    $region12: #{tpu_custom_call.1} parent=1 // pred_region
      _
    $region13: #{tpu_custom_call.1} parent=1 // pred_fallthru
      _
    // Predicated region
    $region14: #{tpu_custom_call.1} parent=1 // pred_check
      _
    $region15: #{tpu_custom_call.1} parent=1 // pred_check_branch
      %36 = sbr.rel (0) target = $region17
    $region16: #{tpu_custom_call.1} parent=1 // pred_region
      %37 = dma.done [#allocation4], 256
    $region17: #{tpu_custom_call.1} parent=1 // pred_fallthru
      _
    // Predicated region
    $region18: #{tpu_custom_call.1} parent=1 // pred_check
      _
    $region19: #{tpu_custom_call.1} parent=1 // pred_check_branch
      %39 = sbr.rel (0) target = $region21
    $region20: #{tpu_custom_call.1} parent=1 // pred_region
      %40 = dma.done [#allocation6], 128
    $region21: #{tpu_custom_call.1} parent=1 // pred_fallthru
      _
    %v41 = vld [vmem:[#allocation3] sm:$0xff]
    %v42 = vld [vmem:[#allocation3 + $0x8] sm:$0xff]
    %v43 = vld [vmem:[#allocation5] sm:$0xff]
    %v44 = vmul.f32 %v41, %v43
    %v45 = vmul.f32 %v42, %v43
    %46 = vadd.xlane.f32.xlu0 %v44
    %v47 = vpop.xlane.xlu0 %46
    %48 = vadd.xlane.f32.xlu0 %v45
    %v49 = vpop.xlane.xlu0 %48
    %v52 = vlaneseq
    %v53 = vand.u32 %v52, 127
    %v54 = vlaneseq
    %v55 = vshrl.u32 %v54, 7
    %v56 = vsub.s32 %v53, %v55
    %v57 = vrot.slane %v47, %v56
    %v58 = vlaneseq
    %v59 = vshrl.u32 %v58, 7
    %v60 = vsub.s32 %v53, %v59
    %v61 = vrot.slane %v49, %v60
    %vm62 = vcmask 1041409
    %v63 = vsel %vm62, %v61, %v57
    %vm65 = vcmask 58368
    %v66 = vsel %vm65, %v63, 0.0
    %67 = vadd.xlane.f32.xlu0 %v66
    %v68 = vpop.xlane.xlu0 %67
    %s69 = sld [smem:[#allocation2]]
    %v70 = vstv %s69
    %v71 = vadd.f32 %v68, %v70
    %vm72 = vcmask 1024
    %73 = vst.msk [vmem:[%s3] sm:$0x3] %vm72, %v71
    // Predicated region
    $region22: #{tpu_custom_call.1} parent=1 // pred_check
      _
    $region23: #{tpu_custom_call.1} parent=1 // pred_check_branch
      %75 = sbr.rel (0) target = $region25
    $region24: #{tpu_custom_call.1} parent=1 // pred_region
      _
    $region25: #{tpu_custom_call.1} parent=1 // pred_fallthru
      _
    // Predicated region
    $region26: #{tpu_custom_call.1} parent=1 // pred_check
      _
    $region27: #{tpu_custom_call.1} parent=1 // pred_check_branch
      %77 = sbr.rel (0) target = $region29
    $region28: #{tpu_custom_call.1} parent=1 // pred_region
      _
    $region29: #{tpu_custom_call.1} parent=1 // pred_fallthru
      _
    %78 = vsyncpa [#allocation4], 1
    %79 = vsyncpa [#allocation6], 1

</llo_original>
